<compile_context>
chip_gen: v7x
topology: tpu7x:2x2x1
jax: 0.10.0
libtpu: 0.0.40
codegen_flags: <defaults>
</compile_context>

<pallas_src>
from functools import partial

import jax
import jax.numpy as jnp
from jax.experimental import pallas as pl
from jax.experimental.pallas import tpu as pltpu


def _round_up(x, m):
    return ((x + m - 1) // m) * m


def _vmem_limit_bytes():
    """Generation-aware scoped-VMEM limit (conservative on v7x's 64 MiB parts)."""
    cap = 64 * 1024 * 1024
    try:
        info = pltpu.get_tpu_info()
        cap = int(getattr(info, "vmem_capacity_bytes", cap)) or cap
    except Exception:
        pass
    if cap >= 100 * 1024 * 1024:        # v5e / v6e: 128 MiB physical VMEM per TC
        return 64 * 1024 * 1024
    return 40 * 1024 * 1024             # v7x: 64 MiB physical per TC


def _choose_block_rows(n_rows, n_cols, itemsize, n_streamed, vmem_limit):
    """Largest row tile s.t. pipelined input buffers + f32 temporaries fit VMEM."""
    sub = 16 if itemsize < 4 else 8              # bf16 packs 16 sublanes per vreg
    n_temps = 6                                  # x, x-xmax, exp(.), t, t_exp, product (f32)
    per_row = n_streamed * 2 * n_cols * itemsize + n_temps * n_cols * 4
    budget = int(vmem_limit * 0.7)               # headroom for compiler scratch / output bufs
    cap = max(sub, budget // max(per_row, 1))
    cap = min(cap, 8192)
    if n_rows > sub:                             # ensure >= 2 tiles so both v7x TCs get work
        cap = min(cap, _round_up(-(-n_rows // 2), sub))
    block_rows = min(cap, _round_up(n_rows, sub))
    return max(sub, (block_rows // sub) * sub)


def _soft_ce_kernel(x_ref, t_ref, *rest, n_rows, block_rows, has_mask_pos):
    if has_mask_pos:
        mp_ref, out_ref = rest
    else:
        (out_ref,) = rest

    i = pl.program_id(0)

    x = x_ref[...].astype(jnp.float32)           # (block_rows, C) prediction logits
    t = t_ref[...].astype(jnp.float32)           # (block_rows, C) target logits
    if has_mask_pos:
        t = t + mp_ref[...].astype(jnp.float32)  # fused pre-softmax additive mask

    # Shifted form: loss_row = lse(x) - <softmax(t), x>
    #             = log(sum(exp(x - xmax))) - <x - xmax, softmax(t)>   (sum softmax = 1)
    x_max = jnp.max(x, axis=-1, keepdims=True)
    x_shift = x - x_max
    x_lse_shift = jnp.log(jnp.sum(jnp.exp(x_shift), axis=-1, keepdims=True))

    t_max = jnp.max(t, axis=-1, keepdims=True)
    t_exp = jnp.exp(t - t_max)
    t_den = jnp.sum(t_exp, axis=-1, keepdims=True)

    xt = jnp.sum(x_shift * t_exp, axis=-1, keepdims=True)
    loss_row = x_lse_shift - xt * pl.reciprocal(t_den, approx=False)   # (block_rows, 1)

    # Mask padded tail rows with a select (garbage/NaN in padded rows must not propagate).
    row_idx = i * block_rows + jax.lax.broadcasted_iota(jnp.int32, (block_rows, 1), 0)
    loss_row = jnp.where(row_idx < n_rows, loss_row, 0.0)

    # Lane-dense writeback: splat the per-tile partial sum into one (8,128) f32 block.
    out_ref[...] = jnp.broadcast_to(jnp.sum(loss_row), (1, 8, 128))


def soft_cross_entropy(input_logits, target_logits, mask=None, mask_pos=None,
                       block_rows=None):
    """Pallas implementation of SoftCrossEntropy.forward (mask=None path)."""
    # TODO(synk): `mask` branch (elementwise mask + normalize by sum(mask)) not implemented.
    assert mask is None
    assert input_logits.ndim == 2 and input_logits.shape == target_logits.shape

    N, C = input_logits.shape
    itemsize = max(jnp.dtype(input_logits.dtype).itemsize,
                   jnp.dtype(target_logits.dtype).itemsize)

    has_mask_pos = mask_pos is not None
    n_streamed = 2
    mp2 = None
    mp_is_row = False
    if has_mask_pos:
        mp = jnp.asarray(mask_pos)
        if mp.size == 1 or (mp.size == C and (mp.ndim <= 1 or mp.shape[0] == 1)):
            mp2 = jnp.broadcast_to(mp.reshape((1, -1)), (1, C))    # per-class bias: tiny tile
            mp_is_row = True
        else:
            mp2 = jnp.broadcast_to(mp, (N, C))                     # full elementwise bias
            n_streamed = 3

    vmem_limit = _vmem_limit_bytes()
    if block_rows is None:
        block_rows = _choose_block_rows(N, C, itemsize, n_streamed, vmem_limit)
    # TODO(synk): for vocab-scale C (>32k) add an inner "arbitrary" C grid axis with
    # online-LSE accumulators so block_rows stays large within v7x's 64 MiB VMEM.

    num_tiles = pl.cdiv(N, block_rows)

    in_specs = [
        pl.BlockSpec((block_rows, C), lambda i: (i, 0)),
        pl.BlockSpec((block_rows, C), lambda i: (i, 0)),
    ]
    args = [input_logits, target_logits]
    if has_mask_pos:
        if mp_is_row:
            in_specs.append(pl.BlockSpec((1, C), lambda i: (0, 0)))
        else:
            in_specs.append(pl.BlockSpec((block_rows, C), lambda i: (i, 0)))
        args.append(mp2)

    partials = pl.pallas_call(
        partial(_soft_ce_kernel, n_rows=N, block_rows=block_rows,
                has_mask_pos=has_mask_pos),
        out_shape=jax.ShapeDtypeStruct((num_tiles, 8, 128), jnp.float32),
        grid=(num_tiles,),
        in_specs=in_specs,
        out_specs=pl.BlockSpec((1, 8, 128), lambda i: (i, 0, 0)),
        compiler_params=pltpu.CompilerParams(
            dimension_semantics=("parallel",),     # independent tiles -> megacore-shardable
            vmem_limit_bytes=vmem_limit,
        ),
    )(*args)

    # Tiny final reduction (num_tiles scalars) + normalization in the wrapper.
    return jnp.sum(partials[:, 0, 0]) / N


def _reference(input_logits, target_logits, mask_pos=None):
    t = target_logits
    if mask_pos is not None:
        t = t + mask_pos
    log_likelihood = -jax.nn.log_softmax(input_logits.astype(jnp.float32), axis=1)
    p = jax.nn.softmax(t.astype(jnp.float32), axis=1)
    return jnp.sum(log_likelihood * p) / input_logits.shape[0]


if __name__ == "__main__":
    key = jax.random.PRNGKey(0)
    ks = jax.random.split(key, 8)

    # small (sample_num, class_num) toy shape
    N, C = 8, 32
    x = jax.random.normal(ks[0], (N, C), dtype=jnp.float32)
    t = jax.random.normal(ks[1], (N, C), dtype=jnp.float32)
    loss = jax.block_until_ready(soft_cross_entropy(x, t))
    ref = _reference(x, t)
    assert jnp.allclose(loss, ref, rtol=1e-5, atol=1e-5), (loss, ref)

    # ragged N (masked tail tile), non-lane-aligned C, large common logit offset
    N2, C2 = 13, 160
    x2 = jax.random.normal(ks[2], (N2, C2), dtype=jnp.float32) + 100.0
    t2 = jax.random.normal(ks[3], (N2, C2), dtype=jnp.float32)
    loss2 = jax.block_until_ready(soft_cross_entropy(x2, t2))
    ref2 = _reference(x2, t2)
    assert jnp.allclose(loss2, ref2, rtol=1e-5, atol=1e-5), (loss2, ref2)

    # fused mask_pos: per-class bias (broadcast (1,C) tile) and full (N,C) bias
    N3, C3 = 12, 64
    x3 = jax.random.normal(ks[4], (N3, C3), dtype=jnp.float32)
    t3 = jax.random.normal(ks[5], (N3, C3), dtype=jnp.float32)
    mp_row = jax.random.normal(ks[6], (C3,), dtype=jnp.float32)
    loss3 = jax.block_until_ready(soft_cross_entropy(x3, t3, mask_pos=mp_row))
    ref3 = _reference(x3, t3, mask_pos=mp_row)
    assert jnp.allclose(loss3, ref3, rtol=1e-5, atol=1e-5), (loss3, ref3)

    mp_full = jax.random.normal(ks[7], (N3, C3), dtype=jnp.float32)
    loss4 = jax.block_until_ready(soft_cross_entropy(x3, t3, mask_pos=mp_full))
    ref4 = _reference(x3, t3, mask_pos=mp_full)
    assert jnp.allclose(loss4, ref4, rtol=1e-5, atol=1e-5), (loss4, ref4)

    # medium shape exercising the >=2-tile megacore split and larger row tiles
    N5, C5 = 1024, 256
    x5 = jax.random.normal(ks[0], (N5, C5), dtype=jnp.float32)
    t5 = jax.random.normal(ks[1], (N5, C5), dtype=jnp.float32)
    loss5 = jax.block_until_ready(soft_cross_entropy(x5, t5))
    ref5 = _reference(x5, t5)
    assert jnp.allclose(loss5, ref5, rtol=1e-4, atol=1e-4), (loss5, ref5)

    print("KERNEL_OK")
</pallas_src>

<mosaic_0001>
module attributes {stable_mosaic.version = 11 : i64} {
  func.func @_soft_ce_kernel(%arg0: i32, %arg1: memref<8x32xf32, #tpu.memory_space<vmem>>, %arg2: memref<8x32xf32, #tpu.memory_space<vmem>>, %arg3: memref<1x8x128xf32, #tpu.memory_space<vmem>>) attributes {dimension_semantics = [#tpu.dimension_semantics<parallel>], iteration_bounds = array<i64: 1>, scalar_prefetch = 0 : i64, scratch_operands = 0 : i64, tpu.core_type = #tpu.core_type<tc>, window_params = [{transform_indices = @transform_0, window_bounds = array<i64: 8, 32>}, {transform_indices = @transform_1, window_bounds = array<i64: 8, 32>}, {transform_indices = @transform_2, window_bounds = array<i64: 1, 8, 128>}]} {
    %c0 = arith.constant 0 : index
    %c0_0 = arith.constant 0 : index
    %0 = vector.load %arg1[%c0, %c0_0] : memref<8x32xf32, #tpu.memory_space<vmem>>, vector<8x32xf32>
    %c0_1 = arith.constant 0 : index
    %c0_2 = arith.constant 0 : index
    %1 = vector.load %arg2[%c0_1, %c0_2] : memref<8x32xf32, #tpu.memory_space<vmem>>, vector<8x32xf32>
    %cst = arith.constant dense<0xFF800000> : vector<8xf32>
    %2 = vector.multi_reduction <maximumf>, %0, %cst [1] : vector<8x32xf32> to vector<8xf32>
    %3 = vector.shape_cast %2 : vector<8xf32> to vector<8x1xf32>
    %4 = vector.broadcast %3 : vector<8x1xf32> to vector<8x32xf32>
    %5 = arith.subf %0, %4 : vector<8x32xf32>
    %6 = math.exp %5 : vector<8x32xf32>
    %cst_3 = arith.constant dense<0.000000e+00> : vector<8xf32>
    %7 = vector.multi_reduction <add>, %6, %cst_3 [1] : vector<8x32xf32> to vector<8xf32>
    %8 = vector.shape_cast %7 : vector<8xf32> to vector<8x1xf32>
    %9 = math.log %8 : vector<8x1xf32>
    %cst_4 = arith.constant dense<0xFF800000> : vector<8xf32>
    %10 = vector.multi_reduction <maximumf>, %1, %cst_4 [1] : vector<8x32xf32> to vector<8xf32>
    %11 = vector.shape_cast %10 : vector<8xf32> to vector<8x1xf32>
    %12 = vector.broadcast %11 : vector<8x1xf32> to vector<8x32xf32>
    %13 = arith.subf %1, %12 : vector<8x32xf32>
    %14 = math.exp %13 : vector<8x32xf32>
    %cst_5 = arith.constant dense<0.000000e+00> : vector<8xf32>
    %15 = vector.multi_reduction <add>, %14, %cst_5 [1] : vector<8x32xf32> to vector<8xf32>
    %16 = vector.shape_cast %15 : vector<8xf32> to vector<8x1xf32>
    %17 = arith.mulf %5, %14 : vector<8x32xf32>
    %cst_6 = arith.constant dense<0.000000e+00> : vector<8xf32>
    %18 = vector.multi_reduction <add>, %17, %cst_6 [1] : vector<8x32xf32> to vector<8xf32>
    %19 = vector.shape_cast %18 : vector<8xf32> to vector<8x1xf32>
    %20 = tpu.reciprocal %16 : vector<8x1xf32> -> vector<8x1xf32>
    %21 = arith.mulf %19, %20 : vector<8x1xf32>
    %22 = arith.subf %9, %21 : vector<8x1xf32>
    %c8_i32 = arith.constant 8 : i32
    %23 = arith.muli %arg0, %c8_i32 : i32
    %24 = tpu.iota {dimensions = array<i32: 0>} : vector<8x1xi32>
    %25 = vector.broadcast %23 : i32 to vector<8x1xi32>
    %26 = arith.addi %25, %24 : vector<8x1xi32>
    %c8_i32_7 = arith.constant 8 : i32
    %27 = vector.broadcast %c8_i32_7 : i32 to vector<8x1xi32>
    %28 = arith.cmpi slt, %26, %27 : vector<8x1xi32>
    %cst_8 = arith.constant 0.000000e+00 : f32
    %29 = vector.broadcast %cst_8 : f32 to vector<8x1xf32>
    %30 = arith.select %28, %22, %29 : vector<8x1xi1>, vector<8x1xf32>
    %31 = vector.shape_cast %30 : vector<8x1xf32> to vector<1x8x1xf32>
    %cst_9 = arith.constant dense<0.000000e+00> : vector<1xf32>
    %32 = vector.multi_reduction <add>, %31, %cst_9 [1, 2] : vector<1x8x1xf32> to vector<1xf32>
    %33 = vector.shape_cast %32 : vector<1xf32> to vector<1x1x1xf32>
    %34 = vector.extract %33[0, 0, 0] : f32 from vector<1x1x1xf32>
    %35 = vector.broadcast %34 : f32 to vector<1x8x128xf32>
    %c0_10 = arith.constant 0 : index
    %c0_11 = arith.constant 0 : index
    %c0_12 = arith.constant 0 : index
    %36 = vector.load %arg3[%c0_10, %c0_11, %c0_12] : memref<1x8x128xf32, #tpu.memory_space<vmem>>, vector<1x8x128xf32>
    tpu.vector_store %arg3[%c0_10, %c0_11, %c0_12], %35 {strides = array<i32>} : memref<1x8x128xf32, #tpu.memory_space<vmem>>, vector<1x8x128xf32>,
    return
  }
  func.func @transform_0(%arg0: i32) -> (i32, i32) {
    %c0_i32 = arith.constant 0 : i32
    %c0_i32_0 = arith.constant 0 : i32
    return %arg0, %c0_i32 : i32, i32
  }
  func.func @transform_1(%arg0: i32) -> (i32, i32) {
    %c0_i32 = arith.constant 0 : i32
    %c0_i32_0 = arith.constant 0 : i32
    return %arg0, %c0_i32 : i32, i32
  }
  func.func @transform_2(%arg0: i32) -> (i32, i32, i32) {
    %c0_i32 = arith.constant 0 : i32
    %c0_i32_0 = arith.constant 0 : i32
    %c0_i32_1 = arith.constant 0 : i32
    return %arg0, %c0_i32, %c0_i32_0 : i32, i32, i32
  }
}

</mosaic_0001>

<llo_original>
// kernel: tpu_custom_call.1
$region0: #{tpu_custom_call.1}
  #allocation0 [shape = 'u32[]', space=smem, size = 0x4, offset = 0x4, fixed_abs, tag = 'smem constant byte address 0x4 - core index']
  #allocation1 [shape = 'u32[144,128]{1,0:T(1,128)}', space=vmem, size = 0x12000, scoped, tag = 'internal scratch']
  %s0 = inlined_call_operand.hbm [shape: f32[8,32], index: 0, kind: input, shape index: {}]
  %s1 = inlined_call_operand.hbm [shape: f32[8,32], index: 1, kind: input, shape index: {}]
  %s2 = inlined_call_operand.hbm [shape: f32[1,8,128], index: 2, kind: output, shape index: {}]
  %s3 = sld [smem:[#allocation0]]
  $region26: #{tpu_custom_call.1} parent=0
    _
  %s5 = ssub.s32 1, %s3
  %s6 = scalar_select 0, %s5, %s3
  $region1: #{tpu_custom_call.1} parent=0
    #allocation2 [shape = 'u8[4096]{0}', space=vmem, size = 0x1000, scoped, tag = 'input window, operand 0, single buffered']
    #allocation3 [shape = 's32[1]{0}', space=sflag, size = 0x4, scoped, tag = 'scoped memory for tpu_custom_call.1']
    #allocation4 [shape = 's32[1]{0}', space=sflag, size = 0x4, scoped, tag = 'scoped memory for tpu_custom_call.1']
    #allocation5 [shape = 'u8[4096]{0}', space=vmem, size = 0x1000, scoped, tag = 'input window, operand 1, single buffered']
    #allocation6 [shape = 's32[1]{0}', space=sflag, size = 0x4, scoped, tag = 'scoped memory for tpu_custom_call.1']
    #allocation7 [shape = 'u8[4096]{0}', space=vmem, size = 0x1000, scoped, tag = 'output window, operand 0, single buffered']
    %7 = vsyncpa [#allocation3], 0
    %8 = vsyncpa [#allocation6], 0
    %9 = vsyncpa [#allocation4], 0
    // Predicated region
    $region2: #{tpu_custom_call.1} parent=1 // pred_check
      _
    $region3: #{tpu_custom_call.1} parent=1 // pred_check_branch
      %11 = sbr.rel (0) target = $region5
    $region4: #{tpu_custom_call.1} parent=1 // pred_region
      %s13 = ssub.s32 128, 128
      %14 = vsyncadd [#allocation3], %s13
      %s16 = sshll.u32 [#allocation2], 4
      %s17 = int_to_ptr.vmem [resolvable:$true] %s16
      %19 = dma.hbm_to_vmem [thread:$0]  %s0, 128, %s17, [#allocation3]
    $region5: #{tpu_custom_call.1} parent=1 // pred_fallthru
      _
    // Predicated region
    $region6: #{tpu_custom_call.1} parent=1 // pred_check
      _
    $region7: #{tpu_custom_call.1} parent=1 // pred_check_branch
      %21 = sbr.rel (0) target = $region9
    $region8: #{tpu_custom_call.1} parent=1 // pred_region
      %s23 = ssub.s32 128, 128
      %24 = vsyncadd [#allocation6], %s23
      %s26 = sshll.u32 [#allocation5], 4
      %s27 = int_to_ptr.vmem [resolvable:$true] %s26
      %29 = dma.hbm_to_vmem [thread:$0]  %s1, 128, %s27, [#allocation6]
    $region9: #{tpu_custom_call.1} parent=1 // pred_fallthru
      _
    // Predicated region
    $region10: #{tpu_custom_call.1} parent=1 // pred_check
      _
    $region11: #{tpu_custom_call.1} parent=1 // pred_check_branch
      %31 = sbr.rel (0) target = $region13
    $region12: #{tpu_custom_call.1} parent=1 // pred_region
      %32 = dma.done [#allocation3], 128
    $region13: #{tpu_custom_call.1} parent=1 // pred_fallthru
      _
    // Predicated region
    $region14: #{tpu_custom_call.1} parent=1 // pred_check
      _
    $region15: #{tpu_custom_call.1} parent=1 // pred_check_branch
      %34 = sbr.rel (0) target = $region17
    $region16: #{tpu_custom_call.1} parent=1 // pred_region
      %35 = dma.done [#allocation6], 128
    $region17: #{tpu_custom_call.1} parent=1 // pred_fallthru
      _
    %v36 = vld [vmem:[#allocation2] sm:$0xff]
    %v37 = vld [vmem:[#allocation5] sm:$0xff]
    %vm38 = vcmask 261120
    %v39 = vsel %vm38, %v36, -inf
    %40 = vmax.xlane.f32.xlu0 %v39
    %v41 = vpop.xlane.xlu0 %40
    %v42 = vsub.f32 %v36, %v41
    %v43 = vmul.f32 %v42, 1.442695
    %v44 = vpow.pop %v43
    %v45 = vsel %vm38, %v44, 0.0
    %46 = vadd.xlane.f32.xlu0 %v45
    %v47 = vpop.xlane.xlu0 %46
    %v48 = vlog2.pop %v47
    %v49 = vmul.f32 %v48, 0.6931472
    %v50 = vsel %vm38, %v37, -inf
    %51 = vmax.xlane.f32.xlu0 %v50
    %v52 = vpop.xlane.xlu0 %51
    %v53 = vsub.f32 %v37, %v52
    %v54 = vmul.f32 %v53, 1.442695
    %v55 = vpow.pop %v54
    %v56 = vsel %vm38, %v55, 0.0
    %57 = vadd.xlane.f32.xlu0 %v56
    %v58 = vpop.xlane.xlu0 %57
    %v59 = vmul.f32 %v42, %v55
    %v60 = vsel %vm38, %v59, 0.0
    %61 = vadd.xlane.f32.xlu0 %v60
    %v62 = vpop.xlane.xlu0 %61
    %v63 = vrcp.pop %v58
    %v64 = vmul.f32 %v62, %v63
    %v65 = vsub.f32 %v49, %v64
    %s66 = smul.u32 0, 8
    %v67 = vlaneseq
    %v68 = vshrl.u32 %v67, 7
    %v69 = vstv %s66
    %v70 = vadd.s32 %v69, %v68
    %vm71 = vcmp.lt.s32.totalorder %v70, 8
    %v72 = vsel %vm71, %v65, 0.0
    %vm73 = vcmask 7168
    %v74 = vsel %vm73, %v72, 0.0
    %75 = vadd.xlane.f32.xlu0 %v74
    %v76 = vpop.xlane.xlu0 %75
    %v77 = vrot.slane %v76, 4
    %v78 = vadd.f32 %v76, %v77
    %v79 = vrot.slane %v78, 2
    %v80 = vadd.f32 %v78, %v79
    %v81 = vrot.slane %v80, 1
    %v82 = vadd.f32 %v80, %v81
    %s83 = vtos %v82
    %v84 = vstv %s83
    %85 = vst [vmem:[#allocation7] sm:$0xff] %v84
    // Predicated region
    $region18: #{tpu_custom_call.1} parent=1 // pred_check
      _
    $region19: #{tpu_custom_call.1} parent=1 // pred_check_branch
      %87 = sbr.rel (0) target = $region21
    $region20: #{tpu_custom_call.1} parent=1 // pred_region
      %s89 = ssub.s32 128, 128
      %90 = vsyncadd [#allocation4], %s89
      %s92 = sshll.u32 [#allocation7], 4
      %s93 = int_to_ptr.vmem [resolvable:$true] %s92
      %95 = dma.vmem_to_hbm [thread:$0]  %s93, 128, %s2, [#allocation4]
    $region21: #{tpu_custom_call.1} parent=1 // pred_fallthru
      _
    // Predicated region
    $region22: #{tpu_custom_call.1} parent=1 // pred_check
      _
    $region23: #{tpu_custom_call.1} parent=1 // pred_check_branch
      %97 = sbr.rel (0) target = $region25
    $region24: #{tpu_custom_call.1} parent=1 // pred_region
      %98 = dma.done [#allocation4], 128
    $region25: #{tpu_custom_call.1} parent=1 // pred_fallthru
      _
    %99 = vsyncpa [#allocation3], 1
    %100 = vsyncpa [#allocation6], 1
    %101 = vsyncpa [#allocation4], 1

</llo_original>
